<compile_context>
chip_gen: v5e
topology: v5e:2x2
jax: 0.10.0
libtpu: 0.0.40
codegen_flags: <defaults>
</compile_context>

<pallas_src>
import jax
import jax.numpy as jnp
from jax.experimental import pallas as pl
from jax.experimental.pallas import tpu as pltpu


def _round_up(x: int, m: int) -> int:
    return ((x + m - 1) // m) * m


def _sublane_multiple(dtype) -> int:
    # sub-32-bit dtypes pack along sublanes: f32 -> 8, bf16 -> 16, int8/fp8 -> 32
    return {4: 8, 2: 16, 1: 32}.get(jnp.dtype(dtype).itemsize, 8)


def _make_hoi_kernel(n_parts: int):
    """Branch-free fused kernel: sum_i(x_i @ W1_i) + b1 -> ReLU -> @ W2 + b2."""

    def kernel(*refs):
        x_refs = refs[:n_parts]
        w1_refs = refs[n_parts:2 * n_parts]
        b1_ref, w2_ref, b2_ref, o_ref = refs[2 * n_parts:]

        # First GEMM as a sum of per-part dots (equivalent to concat along K).
        acc = jnp.dot(x_refs[0][...], w1_refs[0][...],
                      preferred_element_type=jnp.float32)
        for i in range(1, n_parts):
            acc = acc + jnp.dot(x_refs[i][...], w1_refs[i][...],
                                preferred_element_type=jnp.float32)

        h = jnp.maximum(acc + b1_ref[...], 0.0)
        logits = jnp.dot(h.astype(w2_ref.dtype), w2_ref[...],
                         preferred_element_type=jnp.float32)
        o_ref[...] = (logits + b2_ref[...]).astype(o_ref.dtype)

    return kernel


def prepare_hoi_params(w1, b1, w2, b2, part_dims, compute_dtype=jnp.bfloat16):
    """One-time parameter prep (hoisted out of forward).

    Args (torch nn.Linear layout, weight = (out_features, in_features)):
      w1: (hidden, D) = cls_fc1.weight,   b1: (hidden,)
      w2: (num_classes, hidden) = cls_score.weight,   b2: (num_classes,)
      part_dims: tuple of per-part widths of the concatenated input
                 (e.g. (input_size, input_size, input_size) or with spa_conf first).
    Returns a dict of padded / transposed / bf16-cast parameters + metadata.
    """
    part_dims = tuple(int(d) for d in part_dims)
    H, D = w1.shape
    assert sum(part_dims) == D, f"cls_fc1 expects in_features={D}, got parts {part_dims}"
    C, h_w = w2.shape
    assert h_w == H, f"cls_score expects in_features={h_w}, got {H}"

    h_pad = _round_up(H, 128)
    c_pad = _round_up(C, 128)

    # Transpose + zero-pad once; padded rows/cols are zero so they contribute 0.
    w1_t = jnp.zeros((D, h_pad), compute_dtype).at[:, :H].set(w1.T.astype(compute_dtype))
    offs, acc = [], 0
    for d in part_dims:
        offs.append(acc)
        acc += d
    w1_parts = tuple(w1_t[o:o + d] for o, d in zip(offs, part_dims))

    b1_p = jnp.zeros((1, h_pad), jnp.float32).at[0, :H].set(b1.astype(jnp.float32))
    w2_p = jnp.zeros((h_pad, c_pad), compute_dtype).at[:H, :C].set(w2.T.astype(compute_dtype))
    b2_p = jnp.zeros((1, c_pad), jnp.float32).at[0, :C].set(b2.astype(jnp.float32))

    return dict(w1_parts=w1_parts, b1=b1_p, w2=w2_p, b2=b2_p,
                part_dims=part_dims, H=int(H), C=int(C),
                h_pad=h_pad, c_pad=c_pad, compute_dtype=compute_dtype)


def hoi_output_layers_forward(u_x, p_x, o_x, params, spa_conf_maps=None,
                              *, tm=128, out_dtype=None):
    """Forward pass of HoiOutputLayers (fused two-GEMM Pallas kernel).

    Returns: (N, num_classes) action logits in `out_dtype` (default: input dtype).
    """
    parts = [u_x, p_x, o_x] if spa_conf_maps is None else [spa_conf_maps, u_x, p_x, o_x]
    part_dims = params["part_dims"]
    assert len(parts) == len(part_dims), (len(parts), part_dims)

    N = parts[0].shape[0]
    for p, d in zip(parts, part_dims):
        assert p.shape == (N, d), (p.shape, (N, d))

    compute_dtype = params["compute_dtype"]
    out_dtype = out_dtype or parts[0].dtype
    h_pad, c_pad = params["h_pad"], params["c_pad"]
    C = params["C"]
    D_total = sum(part_dims)
    n_parts = len(part_dims)

    # Row tiling: dtype-aware sublane multiple (16 for bf16); no column padding.
    sub = _sublane_multiple(compute_dtype)
    tm_eff = min(_round_up(tm, sub), _round_up(N, sub))
    n_pad = _round_up(N, tm_eff)

    xs = []
    for p in parts:
        xp = p.astype(compute_dtype)
        if n_pad != N:
            xp = jnp.pad(xp, ((0, n_pad - N), (0, 0)))
        xs.append(xp)

    grid = (n_pad // tm_eff,)
    n_tiles = grid[0]

    # TODO(synk): for very large D*H (W1 not fitting VMEM, e.g. input_size >~ 4k)
    # the K/hidden dims should be tiled with a scratch accumulator instead of
    # holding W1 fully resident.

    cd_size = jnp.dtype(compute_dtype).itemsize
    out_size = jnp.dtype(out_dtype).itemsize
    w1_bytes = sum(d * h_pad for d in part_dims) * cd_size
    w2_bytes = h_pad * c_pad * cd_size
    bias_bytes = (h_pad + c_pad) * 4
    x_tile_bytes = sum(tm_eff * d for d in part_dims) * cd_size
    out_tile_bytes = tm_eff * c_pad * out_size
    vmem_needed = (2 * (x_tile_bytes + out_tile_bytes)         # pipelined tiles
                   + 2 * (w1_bytes + w2_bytes + bias_bytes)    # resident operands
                   + tm_eff * h_pad * 4)                       # f32 hidden intermediate
    vmem_limit = int(min(max(vmem_needed + 4 * 1024 * 1024, 32 * 1024 * 1024),
                         128 * 1024 * 1024))

    cost = pl.CostEstimate(
        flops=2 * n_pad * D_total * h_pad + 2 * n_pad * h_pad * c_pad,
        transcendentals=0,
        bytes_accessed=(n_pad * D_total * cd_size          # x parts (read once)
                        + w1_bytes + w2_bytes + bias_bytes  # resident weights
                        + n_pad * c_pad * out_size),        # output
    )

    in_specs = (
        [pl.BlockSpec((tm_eff, d), lambda n: (n, 0)) for d in part_dims]     # x parts
        + [pl.BlockSpec((d, h_pad), lambda n: (0, 0)) for d in part_dims]    # W1 parts (resident)
        + [pl.BlockSpec((1, h_pad), lambda n: (0, 0)),                       # b1 (resident)
           pl.BlockSpec((h_pad, c_pad), lambda n: (0, 0)),                   # W2 (resident)
           pl.BlockSpec((1, c_pad), lambda n: (0, 0))]                       # b2 (resident)
    )

    out_padded = pl.pallas_call(
        _make_hoi_kernel(n_parts),
        out_shape=jax.ShapeDtypeStruct((n_pad, c_pad), out_dtype),
        grid_spec=pltpu.PrefetchScalarGridSpec(
            num_scalar_prefetch=0,
            grid=grid,
            in_specs=in_specs,
            out_specs=pl.BlockSpec((tm_eff, c_pad), lambda n: (n, 0)),
        ),
        compiler_params=pltpu.CompilerParams(
            dimension_semantics=("parallel",) if n_tiles > 1 else ("arbitrary",),
            vmem_limit_bytes=vmem_limit,
        ),
        cost_estimate=cost,
    )(*xs, *params["w1_parts"], params["b1"], params["w2"], params["b2"])

    return out_padded[:N, :C]


# TODO(synk): HoiOutputs.losses()/inference() (BCE loss, score-threshold nonzero
# filtering, per-image topk) are dynamic-shape post-processing, not part of
# forward(); they are intentionally not implemented as Pallas kernels.


if __name__ == "__main__":
    key = jax.random.PRNGKey(0)
    # Module config (small): ShapeSpec(channels=8, height=4, width=4) -> input_size=128
    channels, height, width = 8, 4, 4
    input_size = channels * height * width          # 128
    num_classes = 24                                # number of action classes
    n_pairs = 10                                    # human-object pairs

    k1, k2, k3, k4, k5 = jax.random.split(key, 5)
    u_x = jax.random.normal(k1, (n_pairs, input_size), jnp.float32)
    p_x = jax.random.normal(k2, (n_pairs, input_size), jnp.float32)
    o_x = jax.random.normal(k3, (n_pairs, input_size), jnp.float32)

    # Parameters in torch nn.Linear layout (out_features, in_features), init like the module.
    w1 = 0.01 * jax.random.normal(k4, (input_size, 3 * input_size), jnp.float32)
    b1 = jnp.zeros((input_size,), jnp.float32)
    w2 = 0.01 * jax.random.normal(k5, (num_classes, input_size), jnp.float32)
    b2 = jnp.zeros((num_classes,), jnp.float32)

    # One-time parameter preparation (transpose / pad / bf16 cast / per-part split).
    params = prepare_hoi_params(w1, b1, w2, b2,
                                part_dims=(input_size, input_size, input_size))

    out = hoi_output_layers_forward(u_x, p_x, o_x, params)
    out = jax.block_until_ready(out)

    # Reference (plain JAX, f32) check of the fused forward.
    x_ref = jnp.concatenate([u_x, p_x, o_x], axis=-1)
    ref = jnp.maximum(x_ref @ w1.T + b1, 0.0) @ w2.T + b2
    assert out.shape == (n_pairs, num_classes), out.shape
    assert jnp.allclose(out.astype(jnp.float32), ref, rtol=2e-2, atol=2e-2), \
        "kernel output mismatch vs reference"

    print("KERNEL_OK")
</pallas_src>

<mosaic_0001>
module attributes {stable_mosaic.version = 11 : i64} {
  func.func @kernel(%arg0: i32, %arg1: memref<16x128xbf16, #tpu.memory_space<vmem>>, %arg2: memref<16x128xbf16, #tpu.memory_space<vmem>>, %arg3: memref<16x128xbf16, #tpu.memory_space<vmem>>, %arg4: memref<128x128xbf16, #tpu.memory_space<vmem>>, %arg5: memref<128x128xbf16, #tpu.memory_space<vmem>>, %arg6: memref<128x128xbf16, #tpu.memory_space<vmem>>, %arg7: memref<1x128xf32, #tpu.memory_space<vmem>>, %arg8: memref<128x128xbf16, #tpu.memory_space<vmem>>, %arg9: memref<1x128xf32, #tpu.memory_space<vmem>>, %arg10: memref<16x128xf32, #tpu.memory_space<vmem>>) attributes {dimension_semantics = [#tpu.dimension_semantics<arbitrary>], iteration_bounds = array<i64: 1>, scalar_prefetch = 0 : i64, scratch_operands = 0 : i64, tpu.core_type = #tpu.core_type<tc>, window_params = [{transform_indices = @transform_0, window_bounds = array<i64: 16, 128>}, {transform_indices = @transform_1, window_bounds = array<i64: 16, 128>}, {transform_indices = @transform_2, window_bounds = array<i64: 16, 128>}, {pipeline_mode = #tpu.pipeline_mode<synchronous>, transform_indices = @transform_3, window_bounds = array<i64: 128, 128>}, {pipeline_mode = #tpu.pipeline_mode<synchronous>, transform_indices = @transform_4, window_bounds = array<i64: 128, 128>}, {pipeline_mode = #tpu.pipeline_mode<synchronous>, transform_indices = @transform_5, window_bounds = array<i64: 128, 128>}, {pipeline_mode = #tpu.pipeline_mode<synchronous>, transform_indices = @transform_6, window_bounds = array<i64: 1, 128>}, {pipeline_mode = #tpu.pipeline_mode<synchronous>, transform_indices = @transform_7, window_bounds = array<i64: 128, 128>}, {pipeline_mode = #tpu.pipeline_mode<synchronous>, transform_indices = @transform_8, window_bounds = array<i64: 1, 128>}, {transform_indices = @transform_9, window_bounds = array<i64: 16, 128>}]} {
    %c0 = arith.constant 0 : index
    %c0_0 = arith.constant 0 : index
    %0 = vector.load %arg1[%c0, %c0_0] : memref<16x128xbf16, #tpu.memory_space<vmem>>, vector<16x128xbf16>
    %c0_1 = arith.constant 0 : index
    %c0_2 = arith.constant 0 : index
    %1 = vector.load %arg4[%c0_1, %c0_2] : memref<128x128xbf16, #tpu.memory_space<vmem>>, vector<128x128xbf16>
    %cst = arith.constant dense<0.000000e+00> : vector<16x128xf32>
    %2 = tpu.matmul %0, %1, %cst {dimension_numbers = #tpu.dot_dimension_numbers<[1], [0], [0], [1], [0, 0, 1, 1], [], []>} : vector<16x128xbf16>, vector<128x128xbf16>, vector<16x128xf32> -> vector<16x128xf32>
    %c0_3 = arith.constant 0 : index
    %c0_4 = arith.constant 0 : index
    %3 = vector.load %arg2[%c0_3, %c0_4] : memref<16x128xbf16, #tpu.memory_space<vmem>>, vector<16x128xbf16>
    %c0_5 = arith.constant 0 : index
    %c0_6 = arith.constant 0 : index
    %4 = vector.load %arg5[%c0_5, %c0_6] : memref<128x128xbf16, #tpu.memory_space<vmem>>, vector<128x128xbf16>
    %cst_7 = arith.constant dense<0.000000e+00> : vector<16x128xf32>
    %5 = tpu.matmul %3, %4, %cst_7 {dimension_numbers = #tpu.dot_dimension_numbers<[1], [0], [0], [1], [0, 0, 1, 1], [], []>} : vector<16x128xbf16>, vector<128x128xbf16>, vector<16x128xf32> -> vector<16x128xf32>
    %6 = arith.addf %2, %5 : vector<16x128xf32>
    %c0_8 = arith.constant 0 : index
    %c0_9 = arith.constant 0 : index
    %7 = vector.load %arg3[%c0_8, %c0_9] : memref<16x128xbf16, #tpu.memory_space<vmem>>, vector<16x128xbf16>
    %c0_10 = arith.constant 0 : index
    %c0_11 = arith.constant 0 : index
    %8 = vector.load %arg6[%c0_10, %c0_11] : memref<128x128xbf16, #tpu.memory_space<vmem>>, vector<128x128xbf16>
    %cst_12 = arith.constant dense<0.000000e+00> : vector<16x128xf32>
    %9 = tpu.matmul %7, %8, %cst_12 {dimension_numbers = #tpu.dot_dimension_numbers<[1], [0], [0], [1], [0, 0, 1, 1], [], []>} : vector<16x128xbf16>, vector<128x128xbf16>, vector<16x128xf32> -> vector<16x128xf32>
    %10 = arith.addf %6, %9 : vector<16x128xf32>
    %c0_13 = arith.constant 0 : index
    %c0_14 = arith.constant 0 : index
    %11 = vector.load %arg7[%c0_13, %c0_14] : memref<1x128xf32, #tpu.memory_space<vmem>>, vector<1x128xf32>
    %12 = vector.broadcast %11 : vector<1x128xf32> to vector<16x128xf32>
    %13 = arith.addf %10, %12 : vector<16x128xf32>
    %cst_15 = arith.constant 0.000000e+00 : f32
    %14 = vector.broadcast %cst_15 : f32 to vector<16x128xf32>
    %15 = arith.maximumf %13, %14 : vector<16x128xf32>
    %16 = arith.truncf %15 : vector<16x128xf32> to vector<16x128xbf16>
    %c0_16 = arith.constant 0 : index
    %c0_17 = arith.constant 0 : index
    %17 = vector.load %arg8[%c0_16, %c0_17] : memref<128x128xbf16, #tpu.memory_space<vmem>>, vector<128x128xbf16>
    %cst_18 = arith.constant dense<0.000000e+00> : vector<16x128xf32>
    %18 = tpu.matmul %16, %17, %cst_18 {dimension_numbers = #tpu.dot_dimension_numbers<[1], [0], [0], [1], [0, 0, 1, 1], [], []>} : vector<16x128xbf16>, vector<128x128xbf16>, vector<16x128xf32> -> vector<16x128xf32>
    %c0_19 = arith.constant 0 : index
    %c0_20 = arith.constant 0 : index
    %19 = vector.load %arg9[%c0_19, %c0_20] : memref<1x128xf32, #tpu.memory_space<vmem>>, vector<1x128xf32>
    %20 = vector.broadcast %19 : vector<1x128xf32> to vector<16x128xf32>
    %21 = arith.addf %18, %20 : vector<16x128xf32>
    %c0_21 = arith.constant 0 : index
    %c0_22 = arith.constant 0 : index
    %22 = vector.load %arg10[%c0_21, %c0_22] : memref<16x128xf32, #tpu.memory_space<vmem>>, vector<16x128xf32>
    tpu.vector_store %arg10[%c0_21, %c0_22], %21 {strides = array<i32>} : memref<16x128xf32, #tpu.memory_space<vmem>>, vector<16x128xf32>,
    return
  }
  func.func @transform_0(%arg0: i32) -> (i32, i32) {
    %c0_i32 = arith.constant 0 : i32
    %c0_i32_0 = arith.constant 0 : i32
    return %arg0, %c0_i32 : i32, i32
  }
  func.func @transform_1(%arg0: i32) -> (i32, i32) {
    %c0_i32 = arith.constant 0 : i32
    %c0_i32_0 = arith.constant 0 : i32
    return %arg0, %c0_i32 : i32, i32
  }
  func.func @transform_2(%arg0: i32) -> (i32, i32) {
    %c0_i32 = arith.constant 0 : i32
    %c0_i32_0 = arith.constant 0 : i32
    return %arg0, %c0_i32 : i32, i32
  }
  func.func @transform_3(%arg0: i32) -> (i32, i32) {
    %c0_i32 = arith.constant 0 : i32
    %c0_i32_0 = arith.constant 0 : i32
    %c0_i32_1 = arith.constant 0 : i32
    return %c0_i32, %c0_i32_0 : i32, i32
  }
  func.func @transform_4(%arg0: i32) -> (i32, i32) {
    %c0_i32 = arith.constant 0 : i32
    %c0_i32_0 = arith.constant 0 : i32
    %c0_i32_1 = arith.constant 0 : i32
    return %c0_i32, %c0_i32_0 : i32, i32
  }
  func.func @transform_5(%arg0: i32) -> (i32, i32) {
    %c0_i32 = arith.constant 0 : i32
    %c0_i32_0 = arith.constant 0 : i32
    %c0_i32_1 = arith.constant 0 : i32
    return %c0_i32, %c0_i32_0 : i32, i32
  }
  func.func @transform_6(%arg0: i32) -> (i32, i32) {
    %c0_i32 = arith.constant 0 : i32
    %c0_i32_0 = arith.constant 0 : i32
    %c0_i32_1 = arith.constant 0 : i32
    return %c0_i32, %c0_i32_0 : i32, i32
  }
  func.func @transform_7(%arg0: i32) -> (i32, i32) {
    %c0_i32 = arith.constant 0 : i32
    %c0_i32_0 = arith.constant 0 : i32
    %c0_i32_1 = arith.constant 0 : i32
    return %c0_i32, %c0_i32_0 : i32, i32
  }
  func.func @transform_8(%arg0: i32) -> (i32, i32) {
    %c0_i32 = arith.constant 0 : i32
    %c0_i32_0 = arith.constant 0 : i32
    %c0_i32_1 = arith.constant 0 : i32
    return %c0_i32, %c0_i32_0 : i32, i32
  }
  func.func @transform_9(%arg0: i32) -> (i32, i32) {
    %c0_i32 = arith.constant 0 : i32
    %c0_i32_0 = arith.constant 0 : i32
    return %arg0, %c0_i32 : i32, i32
  }
}

</mosaic_0001>

<llo_original>
// kernel: tpu_custom_call.1
$region0: #{tpu_custom_call.1}
  #allocation0 [shape = 'u32[]', space=smem, size = 0x4, offset = 0x4, fixed_abs, tag = 'smem constant byte address 0x4 - core index']
  #allocation1 [shape = 'u32[72,128]{1,0:T(1,128)}', space=vmem, size = 0x9000, scoped, tag = 'internal scratch']
  %s0 = inlined_call_operand.hbm [shape: bf16[16,128], index: 0, kind: input, shape index: {}]
  %s1 = inlined_call_operand.hbm [shape: bf16[16,128], index: 1, kind: input, shape index: {}]
  %s2 = inlined_call_operand.hbm [shape: bf16[16,128], index: 2, kind: input, shape index: {}]
  %s3 = inlined_call_operand.hbm [shape: bf16[128,128], index: 3, kind: input, shape index: {}]
  %s4 = inlined_call_operand.hbm [shape: bf16[128,128], index: 4, kind: input, shape index: {}]
  %s5 = inlined_call_operand.hbm [shape: bf16[128,128], index: 5, kind: input, shape index: {}]
  %s6 = inlined_call_operand.vmem [shape: f32[1,128], index: 6, kind: input, shape index: {}]
  %s7 = inlined_call_operand.hbm [shape: bf16[128,128], index: 7, kind: input, shape index: {}]
  %s8 = inlined_call_operand.vmem [shape: f32[1,128], index: 8, kind: input, shape index: {}]
  %s9 = inlined_call_operand.hbm [shape: f32[16,128], index: 9, kind: output, shape index: {}]
  %s10 = sld [smem:[#allocation0]]
  $region74: #{tpu_custom_call.1} parent=0
    _
  %s12 = ssub.s32 1, %s10
  %s13 = scalar_select 0, %s12, %s10
  $region1: #{tpu_custom_call.1} parent=0
    #allocation2 [shape = 'u8[4096]{0}', space=vmem, size = 0x1000, scoped, tag = 'input window, operand 0, single buffered']
    #allocation3 [shape = 's32[1]{0}', space=sflag, size = 0x4, scoped, tag = 'scoped memory for tpu_custom_call.1']
    #allocation4 [shape = 's32[1]{0}', space=sflag, size = 0x4, scoped, tag = 'scoped memory for tpu_custom_call.1']
    #allocation5 [shape = 'u8[4096]{0}', space=vmem, size = 0x1000, scoped, tag = 'input window, operand 1, single buffered']
    #allocation6 [shape = 's32[1]{0}', space=sflag, size = 0x4, scoped, tag = 'scoped memory for tpu_custom_call.1']
    #allocation7 [shape = 'u8[4096]{0}', space=vmem, size = 0x1000, scoped, tag = 'input window, operand 2, single buffered']
    #allocation8 [shape = 'u8[32768]{0}', space=vmem, size = 0x8000, scoped, tag = 'input window, operand 3, single buffered']
    #allocation9 [shape = 's32[1]{0}', space=sflag, size = 0x4, scoped, tag = 'scoped memory for tpu_custom_call.1']
    #allocation10 [shape = 'u8[32768]{0}', space=vmem, size = 0x8000, scoped, tag = 'input window, operand 4, single buffered']
    #allocation11 [shape = 'u8[32768]{0}', space=vmem, size = 0x8000, scoped, tag = 'input window, operand 5, single buffered']
    #allocation12 [shape = 's32[1]{0}', space=sflag, size = 0x4, scoped, tag = 'scoped memory for tpu_custom_call.1']
    #allocation13 [shape = 'u8[32768]{0}', space=vmem, size = 0x8000, scoped, tag = 'input window, operand 7, single buffered']
    #allocation14 [shape = 'u8[8192]{0}', space=vmem, size = 0x2000, scoped, tag = 'output window, operand 0, single buffered']
    %14 = vsyncpa [#allocation3], 0
    %15 = vsyncpa [#allocation6], 0
    %16 = vsyncpa [#allocation9], 0
    %17 = vsyncpa [#allocation12], 0
    %18 = vsyncpa [#allocation4], 0
    // Predicated region
    $region2: #{tpu_custom_call.1} parent=1 // pred_check
      _
    $region3: #{tpu_custom_call.1} parent=1 // pred_check_branch
      %20 = sbr.rel (0) target = $region5
    $region4: #{tpu_custom_call.1} parent=1 // pred_region
      %22 = vsyncadd [#allocation3], 0
      %s23 = sshll.u32 %s0, 4
      %s24 = int_to_ptr.hbm [resolvable:$true] %s23
      %s25 = sshll.u32 [#allocation2], 4
      %s26 = int_to_ptr.vmem [resolvable:$true] %s25
      %31 = dma.hbm_to_vmem [thread:$0]  %s24, 128, %s26, [#allocation3], 64, 64, 4
    $region5: #{tpu_custom_call.1} parent=1 // pred_fallthru
      _
    // Predicated region
    $region6: #{tpu_custom_call.1} parent=1 // pred_check
      _
    $region7: #{tpu_custom_call.1} parent=1 // pred_check_branch
      %33 = sbr.rel (0) target = $region9
    $region8: #{tpu_custom_call.1} parent=1 // pred_region
      %35 = vsyncadd [#allocation6], 0
      %s36 = sshll.u32 %s1, 4
      %s37 = int_to_ptr.hbm [resolvable:$true] %s36
      %s38 = sshll.u32 [#allocation5], 4
      %s39 = int_to_ptr.vmem [resolvable:$true] %s38
      %44 = dma.hbm_to_vmem [thread:$0]  %s37, 128, %s39, [#allocation6], 64, 64, 4
    $region9: #{tpu_custom_call.1} parent=1 // pred_fallthru
      _
    // Predicated region
    $region10: #{tpu_custom_call.1} parent=1 // pred_check
      _
    $region11: #{tpu_custom_call.1} parent=1 // pred_check_branch
      %46 = sbr.rel (0) target = $region13
    $region12: #{tpu_custom_call.1} parent=1 // pred_region
      %48 = vsyncadd [#allocation6], 0
      %s49 = sshll.u32 %s2, 4
      %s50 = int_to_ptr.hbm [resolvable:$true] %s49
      %s51 = sshll.u32 [#allocation7], 4
      %s52 = int_to_ptr.vmem [resolvable:$true] %s51
      %57 = dma.hbm_to_vmem [thread:$0]  %s50, 128, %s52, [#allocation6], 64, 64, 4
    $region13: #{tpu_custom_call.1} parent=1 // pred_fallthru
      _
    // Predicated region
    $region14: #{tpu_custom_call.1} parent=1 // pred_check
      _
    $region15: #{tpu_custom_call.1} parent=1 // pred_check_branch
      %59 = sbr.rel (0) target = $region17
    $region16: #{tpu_custom_call.1} parent=1 // pred_region
      %61 = vsyncadd [#allocation9], 0
      %s62 = sshll.u32 %s3, 4
      %s63 = int_to_ptr.hbm [resolvable:$true] %s62
      %s64 = sshll.u32 [#allocation8], 4
      %s65 = int_to_ptr.vmem [resolvable:$true] %s64
      %70 = dma.hbm_to_vmem [thread:$0]  %s63, 1024, %s65, [#allocation9], 64, 64, 4
    $region17: #{tpu_custom_call.1} parent=1 // pred_fallthru
      _
    // Predicated region
    $region18: #{tpu_custom_call.1} parent=1 // pred_check
      _
    $region19: #{tpu_custom_call.1} parent=1 // pred_check_branch
      %72 = sbr.rel (0) target = $region21
    $region20: #{tpu_custom_call.1} parent=1 // pred_region
      %74 = vsyncadd [#allocation9], 0
      %s75 = sshll.u32 %s4, 4
      %s76 = int_to_ptr.hbm [resolvable:$true] %s75
      %s77 = sshll.u32 [#allocation10], 4
      %s78 = int_to_ptr.vmem [resolvable:$true] %s77
      %83 = dma.hbm_to_vmem [thread:$0]  %s76, 1024, %s78, [#allocation9], 64, 64, 4
    $region21: #{tpu_custom_call.1} parent=1 // pred_fallthru
      _
    // Predicated region
    $region22: #{tpu_custom_call.1} parent=1 // pred_check
      _
    $region23: #{tpu_custom_call.1} parent=1 // pred_check_branch
      %85 = sbr.rel (0) target = $region25
    $region24: #{tpu_custom_call.1} parent=1 // pred_region
      %87 = vsyncadd [#allocation12], 0
      %s88 = sshll.u32 %s5, 4
      %s89 = int_to_ptr.hbm [resolvable:$true] %s88
      %s90 = sshll.u32 [#allocation11], 4
      %s91 = int_to_ptr.vmem [resolvable:$true] %s90
      %96 = dma.hbm_to_vmem [thread:$0]  %s89, 1024, %s91, [#allocation12], 64, 64, 4
    $region25: #{tpu_custom_call.1} parent=1 // pred_fallthru
      _
    // Predicated region
    $region26: #{tpu_custom_call.1} parent=1 // pred_check
      _
    $region27: #{tpu_custom_call.1} parent=1 // pred_check_branch
      %98 = sbr.rel (0) target = $region29
    $region28: #{tpu_custom_call.1} parent=1 // pred_region
      _
    $region29: #{tpu_custom_call.1} parent=1 // pred_fallthru
      _
    // Predicated region
    $region30: #{tpu_custom_call.1} parent=1 // pred_check
      _
    $region31: #{tpu_custom_call.1} parent=1 // pred_check_branch
      %100 = sbr.rel (0) target = $region33
    $region32: #{tpu_custom_call.1} parent=1 // pred_region
      %102 = vsyncadd [#allocation12], 0
      %s103 = sshll.u32 %s7, 4
      %s104 = int_to_ptr.hbm [resolvable:$true] %s103
      %s105 = sshll.u32 [#allocation13], 4
      %s106 = int_to_ptr.vmem [resolvable:$true] %s105
      %111 = dma.hbm_to_vmem [thread:$0]  %s104, 1024, %s106, [#allocation12], 64, 64, 4
    $region33: #{tpu_custom_call.1} parent=1 // pred_fallthru
      _
    // Predicated region
    $region34: #{tpu_custom_call.1} parent=1 // pred_check
      _
    $region35: #{tpu_custom_call.1} parent=1 // pred_check_branch
      %113 = sbr.rel (0) target = $region37
    $region36: #{tpu_custom_call.1} parent=1 // pred_region
      _
    $region37: #{tpu_custom_call.1} parent=1 // pred_fallthru
      _
    // Predicated region
    $region38: #{tpu_custom_call.1} parent=1 // pred_check
      _
    $region39: #{tpu_custom_call.1} parent=1 // pred_check_branch
      %115 = sbr.rel (0) target = $region41
    $region40: #{tpu_custom_call.1} parent=1 // pred_region
      %117 = dma.done [#allocation3], 128
    $region41: #{tpu_custom_call.1} parent=1 // pred_fallthru
      _
    // Predicated region
    $region42: #{tpu_custom_call.1} parent=1 // pred_check
      _
    $region43: #{tpu_custom_call.1} parent=1 // pred_check_branch
      %119 = sbr.rel (0) target = $region45
    $region44: #{tpu_custom_call.1} parent=1 // pred_region
      %121 = dma.done [#allocation6], 128
    $region45: #{tpu_custom_call.1} parent=1 // pred_fallthru
      _
    // Predicated region
    $region46: #{tpu_custom_call.1} parent=1 // pred_check
      _
    $region47: #{tpu_custom_call.1} parent=1 // pred_check_branch
      %123 = sbr.rel (0) target = $region49
    $region48: #{tpu_custom_call.1} parent=1 // pred_region
      %125 = dma.done [#allocation6], 128
    $region49: #{tpu_custom_call.1} parent=1 // pred_fallthru
      _
    // Predicated region
    $region50: #{tpu_custom_call.1} parent=1 // pred_check
      _
    $region51: #{tpu_custom_call.1} parent=1 // pred_check_branch
      %127 = sbr.rel (0) target = $region53
    $region52: #{tpu_custom_call.1} parent=1 // pred_region
      %129 = dma.done [#allocation9], 1024
    $region53: #{tpu_custom_call.1} parent=1 // pred_fallthru
      _
    // Predicated region
    $region54: #{tpu_custom_call.1} parent=1 // pred_check
      _
    $region55: #{tpu_custom_call.1} parent=1 // pred_check_branch
      %131 = sbr.rel (0) target = $region57
    $region56: #{tpu_custom_call.1} parent=1 // pred_region
      %133 = dma.done [#allocation9], 1024
    $region57: #{tpu_custom_call.1} parent=1 // pred_fallthru
      _
    // Predicated region
    $region58: #{tpu_custom_call.1} parent=1 // pred_check
      _
    $region59: #{tpu_custom_call.1} parent=1 // pred_check_branch
      %135 = sbr.rel (0) target = $region61
    $region60: #{tpu_custom_call.1} parent=1 // pred_region
      %137 = dma.done [#allocation12], 1024
    $region61: #{tpu_custom_call.1} parent=1 // pred_fallthru
      _
    // Predicated region
    $region62: #{tpu_custom_call.1} parent=1 // pred_check
      _
    $region63: #{tpu_custom_call.1} parent=1 // pred_check_branch
      %139 = sbr.rel (0) target = $region65
    $region64: #{tpu_custom_call.1} parent=1 // pred_region
      %141 = dma.done [#allocation12], 1024
    $region65: #{tpu_custom_call.1} parent=1 // pred_fallthru
      _
    %v142 = vld [vmem:[#allocation2] sm:$0xf]
    %v143 = vld [vmem:[#allocation2 + $0x4] sm:$0xf]
    %v144 = vld [vmem:[#allocation8] sm:$0xf]
    %v145 = vld [vmem:[#allocation8 + $0x4] sm:$0xf]
    %v146 = vld [vmem:[#allocation8 + $0x8] sm:$0xf]
    %v147 = vld [vmem:[#allocation8 + $0xc] sm:$0xf]
    %v148 = vld [vmem:[#allocation8 + $0x10] sm:$0xf]
    %v149 = vld [vmem:[#allocation8 + $0x14] sm:$0xf]
    %v150 = vld [vmem:[#allocation8 + $0x18] sm:$0xf]
    %v151 = vld [vmem:[#allocation8 + $0x1c] sm:$0xf]
    %v152 = vld [vmem:[#allocation8 + $0x20] sm:$0xf]
    %v153 = vld [vmem:[#allocation8 + $0x24] sm:$0xf]
    %v154 = vld [vmem:[#allocation8 + $0x28] sm:$0xf]
    %v155 = vld [vmem:[#allocation8 + $0x2c] sm:$0xf]
    %v156 = vld [vmem:[#allocation8 + $0x30] sm:$0xf]
    %v157 = vld [vmem:[#allocation8 + $0x34] sm:$0xf]
    %v158 = vld [vmem:[#allocation8 + $0x38] sm:$0xf]
    %v159 = vld [vmem:[#allocation8 + $0x3c] sm:$0xf]
    %v160 = vld [vmem:[#allocation5] sm:$0xf]
    %v161 = vld [vmem:[#allocation5 + $0x4] sm:$0xf]
    %v162 = vld [vmem:[#allocation10] sm:$0xf]
    %v163 = vld [vmem:[#allocation10 + $0x4] sm:$0xf]
    %v164 = vld [vmem:[#allocation10 + $0x8] sm:$0xf]
    %v165 = vld [vmem:[#allocation10 + $0xc] sm:$0xf]
    %v166 = vld [vmem:[#allocation10 + $0x10] sm:$0xf]
    %v167 = vld [vmem:[#allocation10 + $0x14] sm:$0xf]
    %v168 = vld [vmem:[#allocation10 + $0x18] sm:$0xf]
    %v169 = vld [vmem:[#allocation10 + $0x1c] sm:$0xf]
    %v170 = vld [vmem:[#allocation10 + $0x20] sm:$0xf]
    %v171 = vld [vmem:[#allocation10 + $0x24] sm:$0xf]
    %v172 = vld [vmem:[#allocation10 + $0x28] sm:$0xf]
    %v173 = vld [vmem:[#allocation10 + $0x2c] sm:$0xf]
    %v174 = vld [vmem:[#allocation10 + $0x30] sm:$0xf]
    %v175 = vld [vmem:[#allocation10 + $0x34] sm:$0xf]
    %v176 = vld [vmem:[#allocation10 + $0x38] sm:$0xf]
    %v177 = vld [vmem:[#allocation10 + $0x3c] sm:$0xf]
    %v180 = vunpack.c.l.b16 %v160
    %v181 = vunpack.c.l.b16 %v161
    %v182 = vpack.c.b16 %v181, %v180
    %v200 = vunpack.c.l.b16 %v162
    %v201 = vunpack.c.l.b16 %v163
    %v202 = vunpack.c.l.b16 %v164
    %v203 = vunpack.c.l.b16 %v165
    %v204 = vunpack.c.l.b16 %v166
    %v205 = vunpack.c.l.b16 %v167
    %v206 = vunpack.c.l.b16 %v168
    %v207 = vunpack.c.l.b16 %v169
    %v208 = vunpack.c.l.b16 %v170
    %v209 = vunpack.c.l.b16 %v171
    %v210 = vunpack.c.l.b16 %v172
    %v211 = vunpack.c.l.b16 %v173
    %v212 = vunpack.c.l.b16 %v174
    %v213 = vunpack.c.l.b16 %v175
    %v214 = vunpack.c.l.b16 %v176
    %v215 = vunpack.c.l.b16 %v177
    %v216 = vpack.c.b16 %v201, %v200
    %v217 = vpack.c.b16 %v203, %v202
    %v218 = vpack.c.b16 %v205, %v204
    %v219 = vpack.c.b16 %v207, %v206
    %v220 = vpack.c.b16 %v209, %v208
    %v221 = vpack.c.b16 %v211, %v210
    %v222 = vpack.c.b16 %v213, %v212
    %v223 = vpack.c.b16 %v215, %v214
    %232 = vmatpush.bf16.msra.mxu0 %v223
    %233 = vmatpush.bf16.msra.mxu0 %v222
    %234 = vmatpush.bf16.msra.mxu0 %v221
    %235 = vmatpush.bf16.msra.mxu0 %v220
    %236 = vmatpush.bf16.msra.mxu0 %v219
    %237 = vmatpush.bf16.msra.mxu0 %v218
    %238 = vmatpush.bf16.msra.mxu0 %v217
    %239 = vmatpush.bf16.msra.mxu0 %v216
    %240 = vmatmul.bf16.gmra.mxu0 %v182
    %v241 = vpop.f32.mrf.mxu0
    %v242 = vadd.f32 0.0, %v241
    %v243 = vpop.f32.mrf.mxu0
    %v244 = vadd.f32 0.0, %v243
    %245 = vdwg.mxu0
    %v248 = vunpack.c.l.b16 %v142
    %v249 = vunpack.c.l.b16 %v143
    %v250 = vpack.c.b16 %v249, %v248
    %v268 = vunpack.c.l.b16 %v144
    %v269 = vunpack.c.l.b16 %v145
    %v270 = vunpack.c.l.b16 %v146
    %v271 = vunpack.c.l.b16 %v147
    %v272 = vunpack.c.l.b16 %v148
    %v273 = vunpack.c.l.b16 %v149
    %v274 = vunpack.c.l.b16 %v150
    %v275 = vunpack.c.l.b16 %v151
    %v276 = vunpack.c.l.b16 %v152
    %v277 = vunpack.c.l.b16 %v153
    %v278 = vunpack.c.l.b16 %v154
    %v279 = vunpack.c.l.b16 %v155
    %v280 = vunpack.c.l.b16 %v156
    %v281 = vunpack.c.l.b16 %v157
    %v282 = vunpack.c.l.b16 %v158
    %v283 = vunpack.c.l.b16 %v159
    %v284 = vpack.c.b16 %v269, %v268
    %v285 = vpack.c.b16 %v271, %v270
    %v286 = vpack.c.b16 %v273, %v272
    %v287 = vpack.c.b16 %v275, %v274
    %v288 = vpack.c.b16 %v277, %v276
    %v289 = vpack.c.b16 %v279, %v278
    %v290 = vpack.c.b16 %v281, %v280
    %v291 = vpack.c.b16 %v283, %v282
    %300 = vmatpush.bf16.msra.mxu0 %v291
    %301 = vmatpush.bf16.msra.mxu0 %v290
    %302 = vmatpush.bf16.msra.mxu0 %v289
    %303 = vmatpush.bf16.msra.mxu0 %v288
    %304 = vmatpush.bf16.msra.mxu0 %v287
    %305 = vmatpush.bf16.msra.mxu0 %v286
    %306 = vmatpush.bf16.msra.mxu0 %v285
    %307 = vmatpush.bf16.msra.mxu0 %v284
    %308 = vmatmul.bf16.gmra.mxu0 %v250
    %v309 = vpop.f32.mrf.mxu0
    %v310 = vadd.f32 %v242, %v309
    %v311 = vpop.f32.mrf.mxu0
    %v312 = vadd.f32 %v244, %v311
    %313 = vdwg.mxu0
    %v314 = vld [vmem:[#allocation7] sm:$0xf]
    %v315 = vld [vmem:[#allocation7 + $0x4] sm:$0xf]
    %v316 = vld [vmem:[#allocation11] sm:$0xf]
    %v317 = vld [vmem:[#allocation11 + $0x4] sm:$0xf]
    %v318 = vld [vmem:[#allocation11 + $0x8] sm:$0xf]
    %v319 = vld [vmem:[#allocation11 + $0xc] sm:$0xf]
    %v320 = vld [vmem:[#allocation11 + $0x10] sm:$0xf]
    %v321 = vld [vmem:[#allocation11 + $0x14] sm:$0xf]
    %v322 = vld [vmem:[#allocation11 + $0x18] sm:$0xf]
    %v323 = vld [vmem:[#allocation11 + $0x1c] sm:$0xf]
    %v324 = vld [vmem:[#allocation11 + $0x20] sm:$0xf]
    %v325 = vld [vmem:[#allocation11 + $0x24] sm:$0xf]
    %v326 = vld [vmem:[#allocation11 + $0x28] sm:$0xf]
    %v327 = vld [vmem:[#allocation11 + $0x2c] sm:$0xf]
    %v328 = vld [vmem:[#allocation11 + $0x30] sm:$0xf]
    %v329 = vld [vmem:[#allocation11 + $0x34] sm:$0xf]
    %v330 = vld [vmem:[#allocation11 + $0x38] sm:$0xf]
    %v331 = vld [vmem:[#allocation11 + $0x3c] sm:$0xf]
    %v334 = vunpack.c.l.b16 %v314
    %v335 = vunpack.c.l.b16 %v315
    %v336 = vpack.c.b16 %v335, %v334
    %v354 = vunpack.c.l.b16 %v316
    %v355 = vunpack.c.l.b16 %v317
    %v356 = vunpack.c.l.b16 %v318
    %v357 = vunpack.c.l.b16 %v319
    %v358 = vunpack.c.l.b16 %v320
    %v359 = vunpack.c.l.b16 %v321
    %v360 = vunpack.c.l.b16 %v322
    %v361 = vunpack.c.l.b16 %v323
    %v362 = vunpack.c.l.b16 %v324
    %v363 = vunpack.c.l.b16 %v325
    %v364 = vunpack.c.l.b16 %v326
    %v365 = vunpack.c.l.b16 %v327
    %v366 = vunpack.c.l.b16 %v328
    %v367 = vunpack.c.l.b16 %v329
    %v368 = vunpack.c.l.b16 %v330
    %v369 = vunpack.c.l.b16 %v331
    %v370 = vpack.c.b16 %v355, %v354
    %v371 = vpack.c.b16 %v357, %v356
    %v372 = vpack.c.b16 %v359, %v358
    %v373 = vpack.c.b16 %v361, %v360
    %v374 = vpack.c.b16 %v363, %v362
    %v375 = vpack.c.b16 %v365, %v364
    %v376 = vpack.c.b16 %v367, %v366
    %v377 = vpack.c.b16 %v369, %v368
    %386 = vmatpush.bf16.msra.mxu0 %v377
    %387 = vmatpush.bf16.msra.mxu0 %v376
    %388 = vmatpush.bf16.msra.mxu0 %v375
    %389 = vmatpush.bf16.msra.mxu0 %v374
    %390 = vmatpush.bf16.msra.mxu0 %v373
    %391 = vmatpush.bf16.msra.mxu0 %v372
    %392 = vmatpush.bf16.msra.mxu0 %v371
    %393 = vmatpush.bf16.msra.mxu0 %v370
    %394 = vmatmul.bf16.gmra.mxu0 %v336
    %v395 = vpop.f32.mrf.mxu0
    %v396 = vadd.f32 0.0, %v395
    %v397 = vpop.f32.mrf.mxu0
    %v398 = vadd.f32 0.0, %v397
    %399 = vdwg.mxu0
    %v400 = vadd.f32 %v310, %v396
    %v401 = vadd.f32 %v312, %v398
    %v402 = vld [vmem:[%s6] sm:$0x1]
    %v404 = vperm.slane %v402, 0
    %v406 = vadd.f32 %v400, %v404
    %v407 = vadd.f32 %v401, %v404
    %v408 = vmax.f32 %v406, 0.0
    %v409 = vmax.f32 %v407, 0.0
    %v410 = vpack.c.bf16 %v409, %v408
    %v411 = vld [vmem:[#allocation13] sm:$0xf]
    %v412 = vld [vmem:[#allocation13 + $0x4] sm:$0xf]
    %v413 = vld [vmem:[#allocation13 + $0x8] sm:$0xf]
    %v414 = vld [vmem:[#allocation13 + $0xc] sm:$0xf]
    %v415 = vld [vmem:[#allocation13 + $0x10] sm:$0xf]
    %v416 = vld [vmem:[#allocation13 + $0x14] sm:$0xf]
    %v417 = vld [vmem:[#allocation13 + $0x18] sm:$0xf]
    %v418 = vld [vmem:[#allocation13 + $0x1c] sm:$0xf]
    %v419 = vld [vmem:[#allocation13 + $0x20] sm:$0xf]
    %v420 = vld [vmem:[#allocation13 + $0x24] sm:$0xf]
    %v421 = vld [vmem:[#allocation13 + $0x28] sm:$0xf]
    %v422 = vld [vmem:[#allocation13 + $0x2c] sm:$0xf]
    %v423 = vld [vmem:[#allocation13 + $0x30] sm:$0xf]
    %v424 = vld [vmem:[#allocation13 + $0x34] sm:$0xf]
    %v425 = vld [vmem:[#allocation13 + $0x38] sm:$0xf]
    %v426 = vld [vmem:[#allocation13 + $0x3c] sm:$0xf]
    %v427 = vld [vmem:[%s8] sm:$0x1]
    %v429 = vperm.slane %v427, 0
    %v447 = vunpack.c.l.b16 %v411
    %v448 = vunpack.c.l.b16 %v412
    %v449 = vunpack.c.l.b16 %v413
    %v450 = vunpack.c.l.b16 %v414
    %v451 = vunpack.c.l.b16 %v415
    %v452 = vunpack.c.l.b16 %v416
    %v453 = vunpack.c.l.b16 %v417
    %v454 = vunpack.c.l.b16 %v418
    %v455 = vunpack.c.l.b16 %v419
    %v456 = vunpack.c.l.b16 %v420
    %v457 = vunpack.c.l.b16 %v421
    %v458 = vunpack.c.l.b16 %v422
    %v459 = vunpack.c.l.b16 %v423
    %v460 = vunpack.c.l.b16 %v424
    %v461 = vunpack.c.l.b16 %v425
    %v462 = vunpack.c.l.b16 %v426
    %v463 = vpack.c.b16 %v448, %v447
    %v464 = vpack.c.b16 %v450, %v449
    %v465 = vpack.c.b16 %v452, %v451
    %v466 = vpack.c.b16 %v454, %v453
    %v467 = vpack.c.b16 %v456, %v455
    %v468 = vpack.c.b16 %v458, %v457
    %v469 = vpack.c.b16 %v460, %v459
    %v470 = vpack.c.b16 %v462, %v461
    %479 = vmatpush.bf16.msra.mxu0 %v470
    %480 = vmatpush.bf16.msra.mxu0 %v469
    %481 = vmatpush.bf16.msra.mxu0 %v468
    %482 = vmatpush.bf16.msra.mxu0 %v467
    %483 = vmatpush.bf16.msra.mxu0 %v466
    %484 = vmatpush.bf16.msra.mxu0 %v465
    %485 = vmatpush.bf16.msra.mxu0 %v464
    %486 = vmatpush.bf16.msra.mxu0 %v463
    %487 = vmatmul.bf16.gmra.mxu0 %v410
    %v488 = vpop.f32.mrf.mxu0
    %v489 = vadd.f32 %v429, %v488
    %v490 = vpop.f32.mrf.mxu0
    %v491 = vadd.f32 %v429, %v490
    %492 = vdwg.mxu0
    %493 = vst [vmem:[#allocation14] sm:$0xff] %v489
    %494 = vst [vmem:[#allocation14 + $0x8] sm:$0xff] %v491
    // Predicated region
    $region66: #{tpu_custom_call.1} parent=1 // pred_check
      _
    $region67: #{tpu_custom_call.1} parent=1 // pred_check_branch
      %496 = sbr.rel (0) target = $region69
    $region68: #{tpu_custom_call.1} parent=1 // pred_region
      %498 = vsyncadd [#allocation4], 0
      %s499 = sshll.u32 [#allocation14], 4
      %s500 = int_to_ptr.vmem [resolvable:$true] %s499
      %s501 = sshll.u32 %s9, 4
      %s502 = int_to_ptr.hbm [resolvable:$true] %s501
      %507 = dma.vmem_to_hbm [thread:$0]  %s500, 256, %s502, [#allocation4], 128, 128, 8
    $region69: #{tpu_custom_call.1} parent=1 // pred_fallthru
      _
    // Predicated region
    $region70: #{tpu_custom_call.1} parent=1 // pred_check
      _
    $region71: #{tpu_custom_call.1} parent=1 // pred_check_branch
      %509 = sbr.rel (0) target = $region73
    $region72: #{tpu_custom_call.1} parent=1 // pred_region
      %511 = dma.done [#allocation4], 256
    $region73: #{tpu_custom_call.1} parent=1 // pred_fallthru
      _
    %512 = vsyncpa [#allocation3], 1
    %513 = vsyncpa [#allocation6], 1
    %514 = vsyncpa [#allocation9], 1
    %515 = vsyncpa [#allocation12], 1
    %516 = vsyncpa [#allocation4], 1

</llo_original>
